<compile_context>
chip_gen: v7x
topology: tpu7x:2x2x1
jax: 0.10.0
libtpu: 0.0.40
codegen_flags: <defaults>
</compile_context>

<pallas_src>
import jax
import jax.numpy as jnp
from jax.experimental import pallas as pl
from jax.experimental.pallas import tpu as pltpu

HIDDEN = 100            # original hidden width
HIDDEN_PAD = 128        # padded hidden width (lane-aligned)
OUT_DIM = 128           # branch/trunk output width (already lane-aligned)
FUSED = 2 * HIDDEN_PAD  # 256: fused branch+trunk width


def _round_up(n, m):
    return ((n + m - 1) // m) * m


# ----------------------------------------------------------------------------
# Kernel
# ----------------------------------------------------------------------------
def deeponet_kernel(xl_ref, w1_ref, b1_ref, w2_ref, b2_ref, w3_ref, b3_ref,
                    b0_ref, out_ref):
    xl = xl_ref[...]                                                # (TB, Kpad)

    # Fused layer 1: [x|l] @ blockdiag(bw1, tw1) + [bb1|tb1], ReLU
    h = jnp.dot(xl, w1_ref[...], preferred_element_type=jnp.float32)
    h = jnp.maximum(h + b1_ref[...], 0.0)                           # (TB, 256)

    # Fused layer 2
    h = jnp.dot(h, w2_ref[...], preferred_element_type=jnp.float32)
    h = jnp.maximum(h + b2_ref[...], 0.0)                           # (TB, 256)

    # Fused layer 3 (no activation)
    z = jnp.dot(h, w3_ref[...], preferred_element_type=jnp.float32)
    z = z + b3_ref[...]                                             # (TB, 256)

    branch = z[:, :HIDDEN_PAD]                                      # (TB, 128)
    trunk = z[:, HIDDEN_PAD:]                                       # (TB, 128)

    # einsum('bi,bi->b'): elementwise product + cross-lane reduce, + scalar b
    res = jnp.sum(branch * trunk, axis=-1, keepdims=True)           # (TB, 1)
    out_ref[...] = res + b0_ref[0]


# ----------------------------------------------------------------------------
# Parameters (PyTorch-style raw params + packed/fused form for the kernel)
# ----------------------------------------------------------------------------
def init_linear(key, in_dim, out_dim):
    """PyTorch nn.Linear default init: uniform(-1/sqrt(fan_in), 1/sqrt(fan_in)).
    Weight is returned already transposed: (in_dim, out_dim)."""
    kw, kb = jax.random.split(key)
    bound = 1.0 / jnp.sqrt(jnp.float32(in_dim))
    w = jax.random.uniform(kw, (in_dim, out_dim), jnp.float32, -bound, bound)
    b = jax.random.uniform(kb, (1, out_dim), jnp.float32, -bound, bound)
    return w, b


def make_deeponet_params(b_dim, t_dim, key):
    keys = jax.random.split(key, 6)
    bw1, bb1 = init_linear(keys[0], b_dim, HIDDEN)
    bw2, bb2 = init_linear(keys[1], HIDDEN, HIDDEN)
    bw3, bb3 = init_linear(keys[2], HIDDEN, OUT_DIM)
    tw1, tb1 = init_linear(keys[3], t_dim, HIDDEN)
    tw2, tb2 = init_linear(keys[4], HIDDEN, HIDDEN)
    tw3, tb3 = init_linear(keys[5], HIDDEN, OUT_DIM)
    b0 = jnp.zeros((1,), jnp.float32)  # Parameter(torch.zeros(1))
    return (bw1, bb1, bw2, bb2, bw3, bb3, tw1, tb1, tw2, tb2, tw3, tb3, b0)


def pack_deeponet_params(params, b_dim, t_dim):
    """Zero-pad to lane-aligned widths and fuse branch/trunk block-diagonally."""
    (bw1, bb1, bw2, bb2, bw3, bb3, tw1, tb1, tw2, tb2, tw3, tb3, b0) = params
    k_in = b_dim + t_dim
    k_pad = _round_up(k_in, 128)

    w1 = jnp.zeros((k_pad, FUSED), jnp.float32)
    w1 = w1.at[:b_dim, :HIDDEN].set(bw1)
    w1 = w1.at[b_dim:k_in, HIDDEN_PAD:HIDDEN_PAD + HIDDEN].set(tw1)
    b1 = jnp.zeros((1, FUSED), jnp.float32)
    b1 = b1.at[:, :HIDDEN].set(bb1)
    b1 = b1.at[:, HIDDEN_PAD:HIDDEN_PAD + HIDDEN].set(tb1)

    w2 = jnp.zeros((FUSED, FUSED), jnp.float32)
    w2 = w2.at[:HIDDEN, :HIDDEN].set(bw2)
    w2 = w2.at[HIDDEN_PAD:HIDDEN_PAD + HIDDEN,
               HIDDEN_PAD:HIDDEN_PAD + HIDDEN].set(tw2)
    b2 = jnp.zeros((1, FUSED), jnp.float32)
    b2 = b2.at[:, :HIDDEN].set(bb2)
    b2 = b2.at[:, HIDDEN_PAD:HIDDEN_PAD + HIDDEN].set(tb2)

    w3 = jnp.zeros((FUSED, FUSED), jnp.float32)
    w3 = w3.at[:HIDDEN, :OUT_DIM].set(bw3)
    w3 = w3.at[HIDDEN_PAD:HIDDEN_PAD + HIDDEN, OUT_DIM:].set(tw3)
    b3 = jnp.zeros((1, FUSED), jnp.float32)
    b3 = b3.at[:, :OUT_DIM].set(bb3)
    b3 = b3.at[:, OUT_DIM:].set(tb3)

    return (w1, b1, w2, b2, w3, b3, b0)


# ----------------------------------------------------------------------------
# Pallas wrapper
# ----------------------------------------------------------------------------
def deeponet_forward(x, l, packed, *, tb_max=512):
    w1, b1, w2, b2, w3, b3, b0 = packed
    B = x.shape[0]
    k_in = x.shape[1] + l.shape[1]
    k_pad = w1.shape[0]

    # Batch tile: multiple of 8 sublanes, capped so per-step VMEM stays small
    # even on v7x's 64 MiB VMEM (resident weights ~0.7 MiB + f32 tiles).
    tb = min(tb_max, _round_up(B, 8))
    b_pad = _round_up(B, tb)

    # Layout plumbing on the host side: concat + zero-pad to (b_pad, k_pad).
    xl = jnp.concatenate([x, l], axis=1)
    xl = jnp.pad(xl, ((0, b_pad - B), (0, k_pad - k_in)))

    grid = (b_pad // tb,)
    out = pl.pallas_call(
        deeponet_kernel,
        out_shape=jax.ShapeDtypeStruct((b_pad, 1), jnp.float32),
        grid=grid,
        in_specs=[
            # streamed batch tile
            pl.BlockSpec((tb, k_pad), lambda i: (i, 0)),
            # weights/biases: constant block index -> DMA'd once, stay resident
            pl.BlockSpec((k_pad, FUSED), lambda i: (0, 0)),
            pl.BlockSpec((1, FUSED), lambda i: (0, 0)),
            pl.BlockSpec((FUSED, FUSED), lambda i: (0, 0)),
            pl.BlockSpec((1, FUSED), lambda i: (0, 0)),
            pl.BlockSpec((FUSED, FUSED), lambda i: (0, 0)),
            pl.BlockSpec((1, FUSED), lambda i: (0, 0)),
            # scalar output bias: whole (1,) array in SMEM
            pl.BlockSpec(memory_space=pltpu.MemorySpace.SMEM),
        ],
        out_specs=pl.BlockSpec((tb, 1), lambda i: (i, 0)),
        compiler_params=pltpu.CompilerParams(
            dimension_semantics=("parallel",)),
    )(xl, w1, b1, w2, b2, w3, b3, b0)
    return out[:B]


# ----------------------------------------------------------------------------
# Pure-JAX reference (matches the PyTorch module, f32 throughout)
# ----------------------------------------------------------------------------
def deeponet_reference(x, l, params):
    (bw1, bb1, bw2, bb2, bw3, bb3, tw1, tb1, tw2, tb2, tw3, tb3, b0) = params
    h = jnp.maximum(x @ bw1 + bb1, 0.0)
    h = jnp.maximum(h @ bw2 + bb2, 0.0)
    bo = h @ bw3 + bb3
    g = jnp.maximum(l @ tw1 + tb1, 0.0)
    g = jnp.maximum(g @ tw2 + tb2, 0.0)
    to = g @ tw3 + tb3
    return jnp.sum(bo * to, axis=-1, keepdims=True) + b0[0]


if __name__ == "__main__":
    B, b_dim, t_dim = 8, 32, 16

    key = jax.random.PRNGKey(0)
    kx, kl, kp = jax.random.split(key, 3)
    x = jax.random.normal(kx, (B, b_dim), jnp.float32)
    l = jax.random.normal(kl, (B, t_dim), jnp.float32)

    raw_params = make_deeponet_params(b_dim, t_dim, kp)
    packed_params = pack_deeponet_params(raw_params, b_dim, t_dim)

    out = deeponet_forward(x, l, packed_params)
    out = jax.block_until_ready(out)

    ref = deeponet_reference(x, l, raw_params)
    assert out.shape == (B, 1), out.shape
    assert jnp.allclose(out, ref, atol=2e-3, rtol=2e-3), (out, ref)

    print("KERNEL_OK")
</pallas_src>

<mosaic_0001>
module attributes {stable_mosaic.version = 11 : i64} {
  func.func @deeponet_kernel(%arg0: i32, %arg1: memref<8x128xf32, #tpu.memory_space<vmem>>, %arg2: memref<128x256xf32, #tpu.memory_space<vmem>>, %arg3: memref<1x256xf32, #tpu.memory_space<vmem>>, %arg4: memref<256x256xf32, #tpu.memory_space<vmem>>, %arg5: memref<1x256xf32, #tpu.memory_space<vmem>>, %arg6: memref<256x256xf32, #tpu.memory_space<vmem>>, %arg7: memref<1x256xf32, #tpu.memory_space<vmem>>, %arg8: memref<1xf32, #tpu.memory_space<smem>>, %arg9: memref<8x1xf32, #tpu.memory_space<vmem>>) attributes {dimension_semantics = [#tpu.dimension_semantics<parallel>], iteration_bounds = array<i64: 1>, scalar_prefetch = 0 : i64, scratch_operands = 0 : i64, tpu.core_type = #tpu.core_type<tc>, window_params = [{transform_indices = @transform_0, window_bounds = array<i64: 8, 128>}, {pipeline_mode = #tpu.pipeline_mode<synchronous>, transform_indices = @transform_1, window_bounds = array<i64: 128, 256>}, {pipeline_mode = #tpu.pipeline_mode<synchronous>, transform_indices = @transform_2, window_bounds = array<i64: 1, 256>}, {pipeline_mode = #tpu.pipeline_mode<synchronous>, transform_indices = @transform_3, window_bounds = array<i64: 256, 256>}, {pipeline_mode = #tpu.pipeline_mode<synchronous>, transform_indices = @transform_4, window_bounds = array<i64: 1, 256>}, {pipeline_mode = #tpu.pipeline_mode<synchronous>, transform_indices = @transform_5, window_bounds = array<i64: 256, 256>}, {pipeline_mode = #tpu.pipeline_mode<synchronous>, transform_indices = @transform_6, window_bounds = array<i64: 1, 256>}, {transform_indices = @transform_7, window_bounds = array<i64: 1>}, {transform_indices = @transform_8, window_bounds = array<i64: 8, 1>}]} {
    %c0 = arith.constant 0 : index
    %c0_0 = arith.constant 0 : index
    %0 = vector.load %arg1[%c0, %c0_0] : memref<8x128xf32, #tpu.memory_space<vmem>>, vector<8x128xf32>
    %c0_1 = arith.constant 0 : index
    %c0_2 = arith.constant 0 : index
    %1 = vector.load %arg2[%c0_1, %c0_2] : memref<128x256xf32, #tpu.memory_space<vmem>>, vector<128x256xf32>
    %cst = arith.constant dense<0.000000e+00> : vector<8x256xf32>
    %2 = tpu.matmul %0, %1, %cst {dimension_numbers = #tpu.dot_dimension_numbers<[1], [0], [0], [1], [0, 0, 1, 1], [], []>} : vector<8x128xf32>, vector<128x256xf32>, vector<8x256xf32> -> vector<8x256xf32>
    %c0_3 = arith.constant 0 : index
    %c0_4 = arith.constant 0 : index
    %3 = vector.load %arg3[%c0_3, %c0_4] : memref<1x256xf32, #tpu.memory_space<vmem>>, vector<1x256xf32>
    %4 = vector.broadcast %3 : vector<1x256xf32> to vector<8x256xf32>
    %5 = arith.addf %2, %4 : vector<8x256xf32>
    %cst_5 = arith.constant 0.000000e+00 : f32
    %6 = vector.broadcast %cst_5 : f32 to vector<8x256xf32>
    %7 = arith.maximumf %5, %6 : vector<8x256xf32>
    %c0_6 = arith.constant 0 : index
    %c0_7 = arith.constant 0 : index
    %8 = vector.load %arg4[%c0_6, %c0_7] : memref<256x256xf32, #tpu.memory_space<vmem>>, vector<256x256xf32>
    %cst_8 = arith.constant dense<0.000000e+00> : vector<8x256xf32>
    %9 = tpu.matmul %7, %8, %cst_8 {dimension_numbers = #tpu.dot_dimension_numbers<[1], [0], [0], [1], [0, 0, 1, 1], [], []>} : vector<8x256xf32>, vector<256x256xf32>, vector<8x256xf32> -> vector<8x256xf32>
    %c0_9 = arith.constant 0 : index
    %c0_10 = arith.constant 0 : index
    %10 = vector.load %arg5[%c0_9, %c0_10] : memref<1x256xf32, #tpu.memory_space<vmem>>, vector<1x256xf32>
    %11 = vector.broadcast %10 : vector<1x256xf32> to vector<8x256xf32>
    %12 = arith.addf %9, %11 : vector<8x256xf32>
    %cst_11 = arith.constant 0.000000e+00 : f32
    %13 = vector.broadcast %cst_11 : f32 to vector<8x256xf32>
    %14 = arith.maximumf %12, %13 : vector<8x256xf32>
    %c0_12 = arith.constant 0 : index
    %c0_13 = arith.constant 0 : index
    %15 = vector.load %arg6[%c0_12, %c0_13] : memref<256x256xf32, #tpu.memory_space<vmem>>, vector<256x256xf32>
    %cst_14 = arith.constant dense<0.000000e+00> : vector<8x256xf32>
    %16 = tpu.matmul %14, %15, %cst_14 {dimension_numbers = #tpu.dot_dimension_numbers<[1], [0], [0], [1], [0, 0, 1, 1], [], []>} : vector<8x256xf32>, vector<256x256xf32>, vector<8x256xf32> -> vector<8x256xf32>
    %c0_15 = arith.constant 0 : index
    %c0_16 = arith.constant 0 : index
    %17 = vector.load %arg7[%c0_15, %c0_16] : memref<1x256xf32, #tpu.memory_space<vmem>>, vector<1x256xf32>
    %18 = vector.broadcast %17 : vector<1x256xf32> to vector<8x256xf32>
    %19 = arith.addf %16, %18 : vector<8x256xf32>
    %20 = vector.extract_strided_slice %19 {offsets = [0, 0], sizes = [8, 128], strides = [1, 1]} : vector<8x256xf32> to vector<8x128xf32>
    %21 = vector.extract_strided_slice %19 {offsets = [0, 128], sizes = [8, 128], strides = [1, 1]} : vector<8x256xf32> to vector<8x128xf32>
    %22 = arith.mulf %20, %21 : vector<8x128xf32>
    %cst_17 = arith.constant dense<0.000000e+00> : vector<8xf32>
    %23 = vector.multi_reduction <add>, %22, %cst_17 [1] : vector<8x128xf32> to vector<8xf32>
    %24 = vector.shape_cast %23 : vector<8xf32> to vector<8x1xf32>
    %c0_18 = arith.constant 0 : index
    %25 = memref.load %arg8[%c0_18] : memref<1xf32, #tpu.memory_space<smem>>
    %26 = vector.broadcast %25 : f32 to vector<8x1xf32>
    %27 = arith.addf %24, %26 : vector<8x1xf32>
    %c0_19 = arith.constant 0 : index
    %c0_20 = arith.constant 0 : index
    %28 = vector.load %arg9[%c0_19, %c0_20] : memref<8x1xf32, #tpu.memory_space<vmem>>, vector<8x1xf32>
    tpu.vector_store %arg9[%c0_19, %c0_20], %27 {strides = array<i32>} : memref<8x1xf32, #tpu.memory_space<vmem>>, vector<8x1xf32>,
    return
  }
  func.func @transform_0(%arg0: i32) -> (i32, i32) {
    %c0_i32 = arith.constant 0 : i32
    %c0_i32_0 = arith.constant 0 : i32
    return %arg0, %c0_i32 : i32, i32
  }
  func.func @transform_1(%arg0: i32) -> (i32, i32) {
    %c0_i32 = arith.constant 0 : i32
    %c0_i32_0 = arith.constant 0 : i32
    %c0_i32_1 = arith.constant 0 : i32
    return %c0_i32, %c0_i32_0 : i32, i32
  }
  func.func @transform_2(%arg0: i32) -> (i32, i32) {
    %c0_i32 = arith.constant 0 : i32
    %c0_i32_0 = arith.constant 0 : i32
    %c0_i32_1 = arith.constant 0 : i32
    return %c0_i32, %c0_i32_0 : i32, i32
  }
  func.func @transform_3(%arg0: i32) -> (i32, i32) {
    %c0_i32 = arith.constant 0 : i32
    %c0_i32_0 = arith.constant 0 : i32
    %c0_i32_1 = arith.constant 0 : i32
    return %c0_i32, %c0_i32_0 : i32, i32
  }
  func.func @transform_4(%arg0: i32) -> (i32, i32) {
    %c0_i32 = arith.constant 0 : i32
    %c0_i32_0 = arith.constant 0 : i32
    %c0_i32_1 = arith.constant 0 : i32
    return %c0_i32, %c0_i32_0 : i32, i32
  }
  func.func @transform_5(%arg0: i32) -> (i32, i32) {
    %c0_i32 = arith.constant 0 : i32
    %c0_i32_0 = arith.constant 0 : i32
    %c0_i32_1 = arith.constant 0 : i32
    return %c0_i32, %c0_i32_0 : i32, i32
  }
  func.func @transform_6(%arg0: i32) -> (i32, i32) {
    %c0_i32 = arith.constant 0 : i32
    %c0_i32_0 = arith.constant 0 : i32
    %c0_i32_1 = arith.constant 0 : i32
    return %c0_i32, %c0_i32_0 : i32, i32
  }
  func.func @transform_7(%arg0: i32) -> i32 {
    %c0_i32 = arith.constant 0 : i32
    %c0_i32_0 = arith.constant 0 : i32
    return %c0_i32 : i32
  }
  func.func @transform_8(%arg0: i32) -> (i32, i32) {
    %c0_i32 = arith.constant 0 : i32
    %c0_i32_0 = arith.constant 0 : i32
    return %arg0, %c0_i32 : i32, i32
  }
}

</mosaic_0001>

<llo_original>
// kernel: tpu_custom_call.1
$region0: #{tpu_custom_call.1}
  #allocation0 [shape = 'u32[]', space=smem, size = 0x4, offset = 0x4, fixed_abs, tag = 'smem constant byte address 0x4 - core index']
  #allocation1 [shape = 'u32[144,128]{1,0:T(1,128)}', space=vmem, size = 0x12000, scoped, tag = 'internal scratch']
  #allocation2 [shape = 'f32[1]{0:T(128)S(6)}', space=smem, size = 0x200, scoped, tag = 'scoped memory for tpu_custom_call.1']
  %s0 = inlined_call_operand.hbm [shape: f32[8,128], index: 0, kind: input, shape index: {}]
  %s1 = inlined_call_operand.hbm [shape: f32[128,256], index: 1, kind: input, shape index: {}]
  %s2 = inlined_call_operand.vmem [shape: f32[1,256], index: 2, kind: input, shape index: {}]
  %s3 = inlined_call_operand.hbm [shape: f32[256,256], index: 3, kind: input, shape index: {}]
  %s4 = inlined_call_operand.vmem [shape: f32[1,256], index: 4, kind: input, shape index: {}]
  %s5 = inlined_call_operand.hbm [shape: f32[256,256], index: 5, kind: input, shape index: {}]
  %s6 = inlined_call_operand.vmem [shape: f32[1,256], index: 6, kind: input, shape index: {}]
  %s7 = inlined_call_operand.<no memory space> [shape: f32[1], index: 7, kind: input, shape index: {}]
  %s8 = inlined_call_operand.vmem [shape: f32[8,1], index: 8, kind: output, shape index: {}]
  %s9 = sld [smem:[#allocation0]]
  $region58: #{tpu_custom_call.1} parent=0
    _
  %s11 = ssub.s32 1, %s9
  %s12 = scalar_select 0, %s11, %s9
  %13 = sst [smem:[#allocation2]] %s7
  $region1: #{tpu_custom_call.1} parent=0
    #allocation3 [shape = 'u8[4096]{0}', space=vmem, size = 0x1000, scoped, tag = 'input window, operand 0, single buffered']
    #allocation4 [shape = 's32[1]{0}', space=sflag, size = 0x4, scoped, tag = 'scoped memory for tpu_custom_call.1']
    #allocation5 [shape = 'u8[131072]{0}', space=vmem, size = 0x20000, scoped, tag = 'input window, operand 1, single buffered']
    #allocation6 [shape = 's32[1]{0}', space=sflag, size = 0x4, scoped, tag = 'scoped memory for tpu_custom_call.1']
    #allocation7 [shape = 'u8[262144]{0}', space=vmem, size = 0x40000, scoped, tag = 'input window, operand 3, single buffered']
    #allocation8 [shape = 'u8[262144]{0}', space=vmem, size = 0x40000, scoped, tag = 'input window, operand 5, single buffered']
    #allocation9 [shape = 's32[1]{0}', space=sflag, size = 0x4, scoped, tag = 'scoped memory for tpu_custom_call.1']
    %14 = vsyncpa [#allocation4], 0
    %15 = vsyncpa [#allocation6], 0
    %16 = vsyncpa [#allocation9], 0
    // Predicated region
    $region2: #{tpu_custom_call.1} parent=1 // pred_check
      _
    $region3: #{tpu_custom_call.1} parent=1 // pred_check_branch
      %18 = sbr.rel (0) target = $region5
    $region4: #{tpu_custom_call.1} parent=1 // pred_region
      %s20 = ssub.s32 128, 128
      %21 = vsyncadd [#allocation4], %s20
      %s23 = sshll.u32 [#allocation3], 4
      %s24 = int_to_ptr.vmem [resolvable:$true] %s23
      %26 = dma.hbm_to_vmem [thread:$0]  %s0, 128, %s24, [#allocation4]
    $region5: #{tpu_custom_call.1} parent=1 // pred_fallthru
      _
    // Predicated region
    $region6: #{tpu_custom_call.1} parent=1 // pred_check
      _
    $region7: #{tpu_custom_call.1} parent=1 // pred_check_branch
      %28 = sbr.rel (0) target = $region9
    $region8: #{tpu_custom_call.1} parent=1 // pred_region
      %s30 = ssub.s32 4096, 4096
      %31 = vsyncadd [#allocation6], %s30
      %s32 = sshll.u32 [#allocation5], 4
      %s33 = int_to_ptr.vmem [resolvable:$true] %s32
      %38 = dma.hbm_to_vmem [thread:$0]  %s1, 4096, %s33, [#allocation6], 256, 256, 16
    $region9: #{tpu_custom_call.1} parent=1 // pred_fallthru
      _
    // Predicated region
    $region10: #{tpu_custom_call.1} parent=1 // pred_check
      _
    $region11: #{tpu_custom_call.1} parent=1 // pred_check_branch
      %40 = sbr.rel (0) target = $region13
    $region12: #{tpu_custom_call.1} parent=1 // pred_region
      _
    $region13: #{tpu_custom_call.1} parent=1 // pred_fallthru
      _
    // Predicated region
    $region14: #{tpu_custom_call.1} parent=1 // pred_check
      _
    $region15: #{tpu_custom_call.1} parent=1 // pred_check_branch
      %42 = sbr.rel (0) target = $region17
    $region16: #{tpu_custom_call.1} parent=1 // pred_region
      %s44 = ssub.s32 8192, 8192
      %45 = vsyncadd [#allocation6], %s44
      %s46 = sshll.u32 [#allocation7], 4
      %s47 = int_to_ptr.vmem [resolvable:$true] %s46
      %52 = dma.hbm_to_vmem [thread:$0]  %s3, 8192, %s47, [#allocation6], 256, 256, 16
    $region17: #{tpu_custom_call.1} parent=1 // pred_fallthru
      _
    // Predicated region
    $region18: #{tpu_custom_call.1} parent=1 // pred_check
      _
    $region19: #{tpu_custom_call.1} parent=1 // pred_check_branch
      %54 = sbr.rel (0) target = $region21
    $region20: #{tpu_custom_call.1} parent=1 // pred_region
      _
    $region21: #{tpu_custom_call.1} parent=1 // pred_fallthru
      _
    // Predicated region
    $region22: #{tpu_custom_call.1} parent=1 // pred_check
      _
    $region23: #{tpu_custom_call.1} parent=1 // pred_check_branch
      %56 = sbr.rel (0) target = $region25
    $region24: #{tpu_custom_call.1} parent=1 // pred_region
      %s58 = ssub.s32 8192, 8192
      %59 = vsyncadd [#allocation9], %s58
      %s60 = sshll.u32 [#allocation8], 4
      %s61 = int_to_ptr.vmem [resolvable:$true] %s60
      %66 = dma.hbm_to_vmem [thread:$0]  %s5, 8192, %s61, [#allocation9], 256, 256, 16
    $region25: #{tpu_custom_call.1} parent=1 // pred_fallthru
      _
    // Predicated region
    $region26: #{tpu_custom_call.1} parent=1 // pred_check
      _
    $region27: #{tpu_custom_call.1} parent=1 // pred_check_branch
      %68 = sbr.rel (0) target = $region29
    $region28: #{tpu_custom_call.1} parent=1 // pred_region
      _
    $region29: #{tpu_custom_call.1} parent=1 // pred_fallthru
      _
    // Predicated region
    $region30: #{tpu_custom_call.1} parent=1 // pred_check
      _
    $region31: #{tpu_custom_call.1} parent=1 // pred_check_branch
      %70 = sbr.rel (0) target = $region33
    $region32: #{tpu_custom_call.1} parent=1 // pred_region
      _
    $region33: #{tpu_custom_call.1} parent=1 // pred_fallthru
      _
    // Predicated region
    $region34: #{tpu_custom_call.1} parent=1 // pred_check
      _
    $region35: #{tpu_custom_call.1} parent=1 // pred_check_branch
      %72 = sbr.rel (0) target = $region37
    $region36: #{tpu_custom_call.1} parent=1 // pred_region
      %73 = dma.done [#allocation4], 128
    $region37: #{tpu_custom_call.1} parent=1 // pred_fallthru
      _
    // Predicated region
    $region38: #{tpu_custom_call.1} parent=1 // pred_check
      _
    $region39: #{tpu_custom_call.1} parent=1 // pred_check_branch
      %75 = sbr.rel (0) target = $region41
    $region40: #{tpu_custom_call.1} parent=1 // pred_region
      %76 = dma.done [#allocation6], 4096
    $region41: #{tpu_custom_call.1} parent=1 // pred_fallthru
      _
    // Predicated region
    $region42: #{tpu_custom_call.1} parent=1 // pred_check
      _
    $region43: #{tpu_custom_call.1} parent=1 // pred_check_branch
      %78 = sbr.rel (0) target = $region45
    $region44: #{tpu_custom_call.1} parent=1 // pred_region
      %79 = dma.done [#allocation6], 8192
    $region45: #{tpu_custom_call.1} parent=1 // pred_fallthru
      _
    // Predicated region
    $region46: #{tpu_custom_call.1} parent=1 // pred_check
      _
    $region47: #{tpu_custom_call.1} parent=1 // pred_check_branch
      %81 = sbr.rel (0) target = $region49
    $region48: #{tpu_custom_call.1} parent=1 // pred_region
      %82 = dma.done [#allocation9], 8192
    $region49: #{tpu_custom_call.1} parent=1 // pred_fallthru
      _
    %v83 = vld [vmem:[#allocation3] sm:$0xff]
    %v84 = vld [vmem:[#allocation5] sm:$0xff]
    %v85 = vld [vmem:[#allocation5 + $0x8] sm:$0xff]
    %v86 = vld [vmem:[#allocation5 + $0x10] sm:$0xff]
    %v87 = vld [vmem:[#allocation5 + $0x18] sm:$0xff]
    %v88 = vld [vmem:[#allocation5 + $0x20] sm:$0xff]
    %v89 = vld [vmem:[#allocation5 + $0x28] sm:$0xff]
    %v90 = vld [vmem:[#allocation5 + $0x30] sm:$0xff]
    %v91 = vld [vmem:[#allocation5 + $0x38] sm:$0xff]
    %v92 = vld [vmem:[#allocation5 + $0x40] sm:$0xff]
    %v93 = vld [vmem:[#allocation5 + $0x48] sm:$0xff]
    %v94 = vld [vmem:[#allocation5 + $0x50] sm:$0xff]
    %v95 = vld [vmem:[#allocation5 + $0x58] sm:$0xff]
    %v96 = vld [vmem:[#allocation5 + $0x60] sm:$0xff]
    %v97 = vld [vmem:[#allocation5 + $0x68] sm:$0xff]
    %v98 = vld [vmem:[#allocation5 + $0x70] sm:$0xff]
    %v99 = vld [vmem:[#allocation5 + $0x78] sm:$0xff]
    %v100 = vld [vmem:[#allocation5 + $0x80] sm:$0xff]
    %v101 = vld [vmem:[#allocation5 + $0x88] sm:$0xff]
    %v102 = vld [vmem:[#allocation5 + $0x90] sm:$0xff]
    %v103 = vld [vmem:[#allocation5 + $0x98] sm:$0xff]
    %v104 = vld [vmem:[#allocation5 + $0xa0] sm:$0xff]
    %v105 = vld [vmem:[#allocation5 + $0xa8] sm:$0xff]
    %v106 = vld [vmem:[#allocation5 + $0xb0] sm:$0xff]
    %v107 = vld [vmem:[#allocation5 + $0xb8] sm:$0xff]
    %v108 = vld [vmem:[#allocation5 + $0xc0] sm:$0xff]
    %v109 = vld [vmem:[#allocation5 + $0xc8] sm:$0xff]
    %v110 = vld [vmem:[#allocation5 + $0xd0] sm:$0xff]
    %v111 = vld [vmem:[#allocation5 + $0xd8] sm:$0xff]
    %v112 = vld [vmem:[#allocation5 + $0xe0] sm:$0xff]
    %v113 = vld [vmem:[#allocation5 + $0xe8] sm:$0xff]
    %v114 = vld [vmem:[#allocation5 + $0xf0] sm:$0xff]
    %v115 = vld [vmem:[#allocation5 + $0xf8] sm:$0xff]
    %v116 = vld [vmem:[%s2] sm:$0x3]
    %v118 = vlaneseq
    %v119 = vshrl.u32 %v118, 7
    %v120 = vsub.s32 0, %v119
    %v121 = vrot.slane %v116, %v120
    %v122 = vlaneseq
    %v123 = vshrl.u32 %v122, 7
    %v124 = vsub.s32 1, %v123
    %v125 = vrot.slane %v116, %v124
    %128 = vmatprep.subr.mxu0 %v85
    %129 = vmatpush1.msra.mxu0 %v84
    %130 = vmatprep.subr.mxu0 %v87
    %131 = vmatpush1.msra.mxu0 %v86
    %132 = vmatprep.subr.mxu0 %v89
    %133 = vmatpush1.msra.mxu0 %v88
    %134 = vmatprep.subr.mxu0 %v91
    %135 = vmatpush1.msra.mxu0 %v90
    %136 = vmatprep.subr.mxu0 %v93
    %137 = vmatpush1.msra.mxu0 %v92
    %138 = vmatprep.subr.mxu0 %v95
    %139 = vmatpush1.msra.mxu0 %v94
    %140 = vmatprep.subr.mxu0 %v97
    %141 = vmatpush1.msra.mxu0 %v96
    %142 = vmatprep.subr.mxu0 %v99
    %143 = vmatpush1.msra.mxu0 %v98
    %144 = vmatprep.subr.mxu0 %v101
    %145 = vmatpush1.msra.mxu0 %v100
    %146 = vmatprep.subr.mxu0 %v103
    %147 = vmatpush1.msra.mxu0 %v102
    %148 = vmatprep.subr.mxu0 %v105
    %149 = vmatpush1.msra.mxu0 %v104
    %150 = vmatprep.subr.mxu0 %v107
    %151 = vmatpush1.msra.mxu0 %v106
    %152 = vmatprep.subr.mxu0 %v109
    %153 = vmatpush1.msra.mxu0 %v108
    %154 = vmatprep.subr.mxu0 %v111
    %155 = vmatpush1.msra.mxu0 %v110
    %156 = vmatprep.subr.mxu0 %v113
    %157 = vmatpush1.msra.mxu0 %v112
    %158 = vmatprep.subr.mxu0 %v115
    %159 = vmatpush1.msra.mxu0 %v114
    %160 = vmatprep.subr.mxu0 0.0
    %161 = vmatpush1.msra.mxu0 0.0
    %162 = vmatprep.subr.mxu0 0.0
    %163 = vmatpush1.msra.mxu0 0.0
    %164 = vmatprep.subr.mxu0 0.0
    %165 = vmatpush1.msra.mxu0 0.0
    %166 = vmatprep.subr.mxu0 0.0
    %167 = vmatpush1.msra.mxu0 0.0
    %168 = vmatprep.subr.mxu0 0.0
    %169 = vmatpush1.msra.mxu0 0.0
    %170 = vmatprep.subr.mxu0 0.0
    %171 = vmatpush1.msra.mxu0 0.0
    %172 = vmatprep.subr.mxu0 0.0
    %173 = vmatpush1.msra.mxu0 0.0
    %174 = vmatprep.subr.mxu0 0.0
    %175 = vmatpush1.msra.mxu0 0.0
    %176 = vmatprep.subr.mxu0 0.0
    %177 = vmatpush1.msra.mxu0 0.0
    %178 = vmatprep.subr.mxu0 0.0
    %179 = vmatpush1.msra.mxu0 0.0
    %180 = vmatprep.subr.mxu0 0.0
    %181 = vmatpush1.msra.mxu0 0.0
    %182 = vmatprep.subr.mxu0 0.0
    %183 = vmatpush1.msra.mxu0 0.0
    %184 = vmatprep.subr.mxu0 0.0
    %185 = vmatpush1.msra.mxu0 0.0
    %186 = vmatprep.subr.mxu0 0.0
    %187 = vmatpush1.msra.mxu0 0.0
    %188 = vmatprep.subr.mxu0 0.0
    %189 = vmatpush1.msra.mxu0 0.0
    %190 = vmatprep.subr.mxu0 0.0
    %191 = vmatpush1.msra.mxu0 0.0
    %192 = vmatprep.mubr.f32.mxu0 0.0
    %193 = vmatmul.mubr.f32.gmra.mrb[0].mxu0 %v83
    %v194 = vpop.f32.mrb[0].mxu0
    %v195 = vadd.f32 %v121, %v194
    %v196 = vpop.f32.mrb[0].mxu0
    %v197 = vadd.f32 %v125, %v196
    %198 = vdwg.mxu0
    %v199 = vmax.f32 %v195, 0.0
    %v200 = vmax.f32 %v197, 0.0
    %v201 = vld [vmem:[#allocation7] sm:$0xff]
    %v202 = vld [vmem:[#allocation7 + $0x8] sm:$0xff]
    %v203 = vld [vmem:[#allocation7 + $0x10] sm:$0xff]
    %v204 = vld [vmem:[#allocation7 + $0x18] sm:$0xff]
    %v205 = vld [vmem:[#allocation7 + $0x20] sm:$0xff]
    %v206 = vld [vmem:[#allocation7 + $0x28] sm:$0xff]
    %v207 = vld [vmem:[#allocation7 + $0x30] sm:$0xff]
    %v208 = vld [vmem:[#allocation7 + $0x38] sm:$0xff]
    %v209 = vld [vmem:[#allocation7 + $0x40] sm:$0xff]
    %v210 = vld [vmem:[#allocation7 + $0x48] sm:$0xff]
    %v211 = vld [vmem:[#allocation7 + $0x50] sm:$0xff]
    %v212 = vld [vmem:[#allocation7 + $0x58] sm:$0xff]
    %v213 = vld [vmem:[#allocation7 + $0x60] sm:$0xff]
    %v214 = vld [vmem:[#allocation7 + $0x68] sm:$0xff]
    %v215 = vld [vmem:[#allocation7 + $0x70] sm:$0xff]
    %v216 = vld [vmem:[#allocation7 + $0x78] sm:$0xff]
    %v217 = vld [vmem:[#allocation7 + $0x80] sm:$0xff]
    %v218 = vld [vmem:[#allocation7 + $0x88] sm:$0xff]
    %v219 = vld [vmem:[#allocation7 + $0x90] sm:$0xff]
    %v220 = vld [vmem:[#allocation7 + $0x98] sm:$0xff]
    %v221 = vld [vmem:[#allocation7 + $0xa0] sm:$0xff]
    %v222 = vld [vmem:[#allocation7 + $0xa8] sm:$0xff]
    %v223 = vld [vmem:[#allocation7 + $0xb0] sm:$0xff]
    %v224 = vld [vmem:[#allocation7 + $0xb8] sm:$0xff]
    %v225 = vld [vmem:[#allocation7 + $0xc0] sm:$0xff]
    %v226 = vld [vmem:[#allocation7 + $0xc8] sm:$0xff]
    %v227 = vld [vmem:[#allocation7 + $0xd0] sm:$0xff]
    %v228 = vld [vmem:[#allocation7 + $0xd8] sm:$0xff]
    %v229 = vld [vmem:[#allocation7 + $0xe0] sm:$0xff]
    %v230 = vld [vmem:[#allocation7 + $0xe8] sm:$0xff]
    %v231 = vld [vmem:[#allocation7 + $0xf0] sm:$0xff]
    %v232 = vld [vmem:[#allocation7 + $0xf8] sm:$0xff]
    %v233 = vld [vmem:[#allocation7 + $0x100] sm:$0xff]
    %v234 = vld [vmem:[#allocation7 + $0x108] sm:$0xff]
    %v235 = vld [vmem:[#allocation7 + $0x110] sm:$0xff]
    %v236 = vld [vmem:[#allocation7 + $0x118] sm:$0xff]
    %v237 = vld [vmem:[#allocation7 + $0x120] sm:$0xff]
    %v238 = vld [vmem:[#allocation7 + $0x128] sm:$0xff]
    %v239 = vld [vmem:[#allocation7 + $0x130] sm:$0xff]
    %v240 = vld [vmem:[#allocation7 + $0x138] sm:$0xff]
    %v241 = vld [vmem:[#allocation7 + $0x140] sm:$0xff]
    %v242 = vld [vmem:[#allocation7 + $0x148] sm:$0xff]
    %v243 = vld [vmem:[#allocation7 + $0x150] sm:$0xff]
    %v244 = vld [vmem:[#allocation7 + $0x158] sm:$0xff]
    %v245 = vld [vmem:[#allocation7 + $0x160] sm:$0xff]
    %v246 = vld [vmem:[#allocation7 + $0x168] sm:$0xff]
    %v247 = vld [vmem:[#allocation7 + $0x170] sm:$0xff]
    %v248 = vld [vmem:[#allocation7 + $0x178] sm:$0xff]
    %v249 = vld [vmem:[#allocation7 + $0x180] sm:$0xff]
    %v250 = vld [vmem:[#allocation7 + $0x188] sm:$0xff]
    %v251 = vld [vmem:[#allocation7 + $0x190] sm:$0xff]
    %v252 = vld [vmem:[#allocation7 + $0x198] sm:$0xff]
    %v253 = vld [vmem:[#allocation7 + $0x1a0] sm:$0xff]
    %v254 = vld [vmem:[#allocation7 + $0x1a8] sm:$0xff]
    %v255 = vld [vmem:[#allocation7 + $0x1b0] sm:$0xff]
    %v256 = vld [vmem:[#allocation7 + $0x1b8] sm:$0xff]
    %v257 = vld [vmem:[#allocation7 + $0x1c0] sm:$0xff]
    %v258 = vld [vmem:[#allocation7 + $0x1c8] sm:$0xff]
    %v259 = vld [vmem:[#allocation7 + $0x1d0] sm:$0xff]
    %v260 = vld [vmem:[#allocation7 + $0x1d8] sm:$0xff]
    %v261 = vld [vmem:[#allocation7 + $0x1e0] sm:$0xff]
    %v262 = vld [vmem:[#allocation7 + $0x1e8] sm:$0xff]
    %v263 = vld [vmem:[#allocation7 + $0x1f0] sm:$0xff]
    %v264 = vld [vmem:[#allocation7 + $0x1f8] sm:$0xff]
    %v265 = vld [vmem:[%s4] sm:$0x3]
    %v267 = vlaneseq
    %v268 = vshrl.u32 %v267, 7
    %v269 = vsub.s32 0, %v268
    %v270 = vrot.slane %v265, %v269
    %v271 = vlaneseq
    %v272 = vshrl.u32 %v271, 7
    %v273 = vsub.s32 1, %v272
    %v274 = vrot.slane %v265, %v273
    %277 = vmatprep.subr.mxu0 %v202
    %278 = vmatpush1.msra.mxu0 %v201
    %279 = vmatprep.subr.mxu0 %v204
    %280 = vmatpush1.msra.mxu0 %v203
    %281 = vmatprep.subr.mxu0 %v206
    %282 = vmatpush1.msra.mxu0 %v205
    %283 = vmatprep.subr.mxu0 %v208
    %284 = vmatpush1.msra.mxu0 %v207
    %285 = vmatprep.subr.mxu0 %v210
    %286 = vmatpush1.msra.mxu0 %v209
    %287 = vmatprep.subr.mxu0 %v212
    %288 = vmatpush1.msra.mxu0 %v211
    %289 = vmatprep.subr.mxu0 %v214
    %290 = vmatpush1.msra.mxu0 %v213
    %291 = vmatprep.subr.mxu0 %v216
    %292 = vmatpush1.msra.mxu0 %v215
    %293 = vmatprep.subr.mxu0 %v218
    %294 = vmatpush1.msra.mxu0 %v217
    %295 = vmatprep.subr.mxu0 %v220
    %296 = vmatpush1.msra.mxu0 %v219
    %297 = vmatprep.subr.mxu0 %v222
    %298 = vmatpush1.msra.mxu0 %v221
    %299 = vmatprep.subr.mxu0 %v224
    %300 = vmatpush1.msra.mxu0 %v223
    %301 = vmatprep.subr.mxu0 %v226
    %302 = vmatpush1.msra.mxu0 %v225
    %303 = vmatprep.subr.mxu0 %v228
    %304 = vmatpush1.msra.mxu0 %v227
    %305 = vmatprep.subr.mxu0 %v230
    %306 = vmatpush1.msra.mxu0 %v229
    %307 = vmatprep.subr.mxu0 %v232
    %308 = vmatpush1.msra.mxu0 %v231
    %309 = vmatprep.subr.mxu0 %v234
    %310 = vmatpush1.msra.mxu0 %v233
    %311 = vmatprep.subr.mxu0 %v236
    %312 = vmatpush1.msra.mxu0 %v235
    %313 = vmatprep.subr.mxu0 %v238
    %314 = vmatpush1.msra.mxu0 %v237
    %315 = vmatprep.subr.mxu0 %v240
    %316 = vmatpush1.msra.mxu0 %v239
    %317 = vmatprep.subr.mxu0 %v242
    %318 = vmatpush1.msra.mxu0 %v241
    %319 = vmatprep.subr.mxu0 %v244
    %320 = vmatpush1.msra.mxu0 %v243
    %321 = vmatprep.subr.mxu0 %v246
    %322 = vmatpush1.msra.mxu0 %v245
    %323 = vmatprep.subr.mxu0 %v248
    %324 = vmatpush1.msra.mxu0 %v247
    %325 = vmatprep.subr.mxu0 %v250
    %326 = vmatpush1.msra.mxu0 %v249
    %327 = vmatprep.subr.mxu0 %v252
    %328 = vmatpush1.msra.mxu0 %v251
    %329 = vmatprep.subr.mxu0 %v254
    %330 = vmatpush1.msra.mxu0 %v253
    %331 = vmatprep.subr.mxu0 %v256
    %332 = vmatpush1.msra.mxu0 %v255
    %333 = vmatprep.subr.mxu0 %v258
    %334 = vmatpush1.msra.mxu0 %v257
    %335 = vmatprep.subr.mxu0 %v260
    %336 = vmatpush1.msra.mxu0 %v259
    %337 = vmatprep.subr.mxu0 %v262
    %338 = vmatpush1.msra.mxu0 %v261
    %339 = vmatprep.subr.mxu0 %v264
    %340 = vmatpush1.msra.mxu0 %v263
    %341 = vmatprep.mubr.f32.mxu0 %v200
    %342 = vmatmul.mubr.f32.gmra.mrb[0].mxu0 %v199
    %v343 = vpop.f32.mrb[0].mxu0
    %v344 = vadd.f32 %v270, %v343
    %v345 = vpop.f32.mrb[0].mxu0
    %v346 = vadd.f32 %v274, %v345
    %347 = vdwg.mxu0
    %v348 = vmax.f32 %v344, 0.0
    %v349 = vmax.f32 %v346, 0.0
    %v350 = vld [vmem:[#allocation8] sm:$0xff]
    %v351 = vld [vmem:[#allocation8 + $0x8] sm:$0xff]
    %v352 = vld [vmem:[#allocation8 + $0x10] sm:$0xff]
    %v353 = vld [vmem:[#allocation8 + $0x18] sm:$0xff]
    %v354 = vld [vmem:[#allocation8 + $0x20] sm:$0xff]
    %v355 = vld [vmem:[#allocation8 + $0x28] sm:$0xff]
    %v356 = vld [vmem:[#allocation8 + $0x30] sm:$0xff]
    %v357 = vld [vmem:[#allocation8 + $0x38] sm:$0xff]
    %v358 = vld [vmem:[#allocation8 + $0x40] sm:$0xff]
    %v359 = vld [vmem:[#allocation8 + $0x48] sm:$0xff]
    %v360 = vld [vmem:[#allocation8 + $0x50] sm:$0xff]
    %v361 = vld [vmem:[#allocation8 + $0x58] sm:$0xff]
    %v362 = vld [vmem:[#allocation8 + $0x60] sm:$0xff]
    %v363 = vld [vmem:[#allocation8 + $0x68] sm:$0xff]
    %v364 = vld [vmem:[#allocation8 + $0x70] sm:$0xff]
    %v365 = vld [vmem:[#allocation8 + $0x78] sm:$0xff]
    %v366 = vld [vmem:[#allocation8 + $0x80] sm:$0xff]
    %v367 = vld [vmem:[#allocation8 + $0x88] sm:$0xff]
    %v368 = vld [vmem:[#allocation8 + $0x90] sm:$0xff]
    %v369 = vld [vmem:[#allocation8 + $0x98] sm:$0xff]
    %v370 = vld [vmem:[#allocation8 + $0xa0] sm:$0xff]
    %v371 = vld [vmem:[#allocation8 + $0xa8] sm:$0xff]
    %v372 = vld [vmem:[#allocation8 + $0xb0] sm:$0xff]
    %v373 = vld [vmem:[#allocation8 + $0xb8] sm:$0xff]
    %v374 = vld [vmem:[#allocation8 + $0xc0] sm:$0xff]
    %v375 = vld [vmem:[#allocation8 + $0xc8] sm:$0xff]
    %v376 = vld [vmem:[#allocation8 + $0xd0] sm:$0xff]
    %v377 = vld [vmem:[#allocation8 + $0xd8] sm:$0xff]
    %v378 = vld [vmem:[#allocation8 + $0xe0] sm:$0xff]
    %v379 = vld [vmem:[#allocation8 + $0xe8] sm:$0xff]
    %v380 = vld [vmem:[#allocation8 + $0xf0] sm:$0xff]
    %v381 = vld [vmem:[#allocation8 + $0xf8] sm:$0xff]
    %v382 = vld [vmem:[#allocation8 + $0x100] sm:$0xff]
    %v383 = vld [vmem:[#allocation8 + $0x108] sm:$0xff]
    %v384 = vld [vmem:[#allocation8 + $0x110] sm:$0xff]
    %v385 = vld [vmem:[#allocation8 + $0x118] sm:$0xff]
    %v386 = vld [vmem:[#allocation8 + $0x120] sm:$0xff]
    %v387 = vld [vmem:[#allocation8 + $0x128] sm:$0xff]
    %v388 = vld [vmem:[#allocation8 + $0x130] sm:$0xff]
    %v389 = vld [vmem:[#allocation8 + $0x138] sm:$0xff]
    %v390 = vld [vmem:[#allocation8 + $0x140] sm:$0xff]
    %v391 = vld [vmem:[#allocation8 + $0x148] sm:$0xff]
    %v392 = vld [vmem:[#allocation8 + $0x150] sm:$0xff]
    %v393 = vld [vmem:[#allocation8 + $0x158] sm:$0xff]
    %v394 = vld [vmem:[#allocation8 + $0x160] sm:$0xff]
    %v395 = vld [vmem:[#allocation8 + $0x168] sm:$0xff]
    %v396 = vld [vmem:[#allocation8 + $0x170] sm:$0xff]
    %v397 = vld [vmem:[#allocation8 + $0x178] sm:$0xff]
    %v398 = vld [vmem:[#allocation8 + $0x180] sm:$0xff]
    %v399 = vld [vmem:[#allocation8 + $0x188] sm:$0xff]
    %v400 = vld [vmem:[#allocation8 + $0x190] sm:$0xff]
    %v401 = vld [vmem:[#allocation8 + $0x198] sm:$0xff]
    %v402 = vld [vmem:[#allocation8 + $0x1a0] sm:$0xff]
    %v403 = vld [vmem:[#allocation8 + $0x1a8] sm:$0xff]
    %v404 = vld [vmem:[#allocation8 + $0x1b0] sm:$0xff]
    %v405 = vld [vmem:[#allocation8 + $0x1b8] sm:$0xff]
    %v406 = vld [vmem:[#allocation8 + $0x1c0] sm:$0xff]
    %v407 = vld [vmem:[#allocation8 + $0x1c8] sm:$0xff]
    %v408 = vld [vmem:[#allocation8 + $0x1d0] sm:$0xff]
    %v409 = vld [vmem:[#allocation8 + $0x1d8] sm:$0xff]
    %v410 = vld [vmem:[#allocation8 + $0x1e0] sm:$0xff]
    %v411 = vld [vmem:[#allocation8 + $0x1e8] sm:$0xff]
    %v412 = vld [vmem:[#allocation8 + $0x1f0] sm:$0xff]
    %v413 = vld [vmem:[#allocation8 + $0x1f8] sm:$0xff]
    %v414 = vld [vmem:[%s6] sm:$0x3]
    %v416 = vlaneseq
    %v417 = vshrl.u32 %v416, 7
    %v418 = vsub.s32 0, %v417
    %v419 = vrot.slane %v414, %v418
    %v420 = vlaneseq
    %v421 = vshrl.u32 %v420, 7
    %v422 = vsub.s32 1, %v421
    %v423 = vrot.slane %v414, %v422
    %426 = vmatprep.subr.mxu0 %v351
    %427 = vmatpush1.msra.mxu0 %v350
    %428 = vmatprep.subr.mxu0 %v353
    %429 = vmatpush1.msra.mxu0 %v352
    %430 = vmatprep.subr.mxu0 %v355
    %431 = vmatpush1.msra.mxu0 %v354
    %432 = vmatprep.subr.mxu0 %v357
    %433 = vmatpush1.msra.mxu0 %v356
    %434 = vmatprep.subr.mxu0 %v359
    %435 = vmatpush1.msra.mxu0 %v358
    %436 = vmatprep.subr.mxu0 %v361
    %437 = vmatpush1.msra.mxu0 %v360
    %438 = vmatprep.subr.mxu0 %v363
    %439 = vmatpush1.msra.mxu0 %v362
    %440 = vmatprep.subr.mxu0 %v365
    %441 = vmatpush1.msra.mxu0 %v364
    %442 = vmatprep.subr.mxu0 %v367
    %443 = vmatpush1.msra.mxu0 %v366
    %444 = vmatprep.subr.mxu0 %v369
    %445 = vmatpush1.msra.mxu0 %v368
    %446 = vmatprep.subr.mxu0 %v371
    %447 = vmatpush1.msra.mxu0 %v370
    %448 = vmatprep.subr.mxu0 %v373
    %449 = vmatpush1.msra.mxu0 %v372
    %450 = vmatprep.subr.mxu0 %v375
    %451 = vmatpush1.msra.mxu0 %v374
    %452 = vmatprep.subr.mxu0 %v377
    %453 = vmatpush1.msra.mxu0 %v376
    %454 = vmatprep.subr.mxu0 %v379
    %455 = vmatpush1.msra.mxu0 %v378
    %456 = vmatprep.subr.mxu0 %v381
    %457 = vmatpush1.msra.mxu0 %v380
    %458 = vmatprep.subr.mxu0 %v383
    %459 = vmatpush1.msra.mxu0 %v382
    %460 = vmatprep.subr.mxu0 %v385
    %461 = vmatpush1.msra.mxu0 %v384
    %462 = vmatprep.subr.mxu0 %v387
    %463 = vmatpush1.msra.mxu0 %v386
    %464 = vmatprep.subr.mxu0 %v389
    %465 = vmatpush1.msra.mxu0 %v388
    %466 = vmatprep.subr.mxu0 %v391
    %467 = vmatpush1.msra.mxu0 %v390
    %468 = vmatprep.subr.mxu0 %v393
    %469 = vmatpush1.msra.mxu0 %v392
    %470 = vmatprep.subr.mxu0 %v395
    %471 = vmatpush1.msra.mxu0 %v394
    %472 = vmatprep.subr.mxu0 %v397
    %473 = vmatpush1.msra.mxu0 %v396
    %474 = vmatprep.subr.mxu0 %v399
    %475 = vmatpush1.msra.mxu0 %v398
    %476 = vmatprep.subr.mxu0 %v401
    %477 = vmatpush1.msra.mxu0 %v400
    %478 = vmatprep.subr.mxu0 %v403
    %479 = vmatpush1.msra.mxu0 %v402
    %480 = vmatprep.subr.mxu0 %v405
    %481 = vmatpush1.msra.mxu0 %v404
    %482 = vmatprep.subr.mxu0 %v407
    %483 = vmatpush1.msra.mxu0 %v406
    %484 = vmatprep.subr.mxu0 %v409
    %485 = vmatpush1.msra.mxu0 %v408
    %486 = vmatprep.subr.mxu0 %v411
    %487 = vmatpush1.msra.mxu0 %v410
    %488 = vmatprep.subr.mxu0 %v413
    %489 = vmatpush1.msra.mxu0 %v412
    %490 = vmatprep.mubr.f32.mxu0 %v349
    %491 = vmatmul.mubr.f32.gmra.mrb[0].mxu0 %v348
    %v492 = vpop.f32.mrb[0].mxu0
    %v493 = vadd.f32 %v419, %v492
    %v494 = vpop.f32.mrb[0].mxu0
    %v495 = vadd.f32 %v423, %v494
    %496 = vdwg.mxu0
    %v497 = vmul.f32 %v493, %v495
    %498 = vadd.xlane.f32.xlu0 %v497
    %v499 = vpop.xlane.xlu0 %498
    %s500 = sld [smem:[#allocation2]]
    %v501 = vstv %s500
    %v502 = vadd.f32 %v499, %v501
    %vm503 = vcmask 7168
    %504 = vst.msk [vmem:[%s8] sm:$0xff] %vm503, %v502
    // Predicated region
    $region50: #{tpu_custom_call.1} parent=1 // pred_check
      _
    $region51: #{tpu_custom_call.1} parent=1 // pred_check_branch
      %506 = sbr.rel (0) target = $region53
    $region52: #{tpu_custom_call.1} parent=1 // pred_region
      _
    $region53: #{tpu_custom_call.1} parent=1 // pred_fallthru
      _
    // Predicated region
    $region54: #{tpu_custom_call.1} parent=1 // pred_check
      _
    $region55: #{tpu_custom_call.1} parent=1 // pred_check_branch
      %508 = sbr.rel (0) target = $region57
    $region56: #{tpu_custom_call.1} parent=1 // pred_region
      _
    $region57: #{tpu_custom_call.1} parent=1 // pred_fallthru
      _
    %509 = vsyncpa [#allocation4], 1
    %510 = vsyncpa [#allocation6], 1
    %511 = vsyncpa [#allocation9], 1

</llo_original>
